<compile_context>
chip_gen: v7x
topology: tpu7x:2x2x1
jax: 0.10.0
libtpu: 0.0.40
codegen_flags: <defaults>
</compile_context>

<pallas_src>
import jax
import jax.numpy as jnp
from jax.experimental import pallas as pl
from jax.experimental.pallas import tpu as pltpu


def _qkv_linear_kernel(x_ref, w_ref, b_ref, o_ref):
    # x_ref: (tm, Kp), w_ref: (Kp, Np), b_ref: (1, Np), o_ref: (tm, Np)
    acc = jnp.dot(x_ref[...], w_ref[...], preferred_element_type=jnp.float32)
    o_ref[...] = (acc + b_ref[...].astype(jnp.float32)).astype(o_ref.dtype)


def _round_up(a, b):
    return (a + b - 1) // b * b


def _pick_pack_factor(dim, out_dim, max_pack=8):
    """Row-pack factor p: fold p consecutive tokens into one kernel row so the
    output tile last-dim (p*out_dim) is a multiple of 128 lanes (unmasked
    stores).  Only applied in the small-dim regime where the kernel is purely
    HBM-bound; large layers are already lane-dense and packing would just add
    MXU flops on zero blocks."""
    if out_dim % 128 == 0 or out_dim > 256 or dim > 256:
        return 1
    p = 1
    while p <= max_pack and (p * out_dim) % 128 != 0:
        p *= 2
    if p > max_pack or (p * out_dim) % 128 != 0:
        return 1
    # Also densify the (narrow-K) input lanes while it stays cheap.
    while p < max_pack and p * dim < 128 and (2 * p * out_dim) % 128 == 0:
        p *= 2
    return p


def qkv_linear(x, weight, bias, qk_dim, *, row_tile=512):
    """x: (..., dim); weight: (out_dim, dim) [PyTorch convention]; bias: (out_dim,).
    Returns (q, kv) with q: (..., qk_dim), kv: (..., qk_dim + dim)."""
    dim = x.shape[-1]
    out_dim = weight.shape[0]
    lead_shape = x.shape[:-1]

    x2d = x.reshape(-1, dim)
    M = x2d.shape[0]

    # ---- lane-packing / tiling decisions (all static) -----------------------
    p = _pick_pack_factor(dim, out_dim)
    kin, kout = p * dim, p * out_dim

    Mp = -(-M // p)                                   # packed-space row count
    tm = _round_up(min(row_tile, _round_up(Mp, 8)), 8)
    Mp_pad = _round_up(Mp, tm)
    M_pad = Mp_pad * p

    # ---- wrapper-side layout plumbing (precompute at load time in a model) --
    if M_pad != M:
        x2d = jnp.pad(x2d, ((0, M_pad - M), (0, 0)))
    xp = x2d.reshape(Mp_pad, kin)

    w_t = weight.T.astype(x.dtype)                    # (dim, out_dim)
    if p == 1:
        wp = w_t
        bp = bias.reshape(1, out_dim)
    else:
        # Block-diagonal weight: row r of xp holds p consecutive tokens, so
        # xp @ wp == [x_{pr+0} @ W^T, ..., x_{pr+p-1} @ W^T] concatenated.
        wp = jnp.kron(jnp.eye(p, dtype=w_t.dtype), w_t)   # (p*dim, p*out_dim)
        bp = jnp.tile(bias, p).reshape(1, kout)

    grid = (Mp_pad // tm,)

    flops = 2 * Mp_pad * kin * kout
    bytes_accessed = (
        xp.size * xp.dtype.itemsize
        + wp.size * wp.dtype.itemsize
        + bp.size * bp.dtype.itemsize
        + Mp_pad * kout * x.dtype.itemsize
    )

    # Weight / bias are grid-invariant (resident); their double-buffer cost is
    # negligible for the VMEM budget at these sizes, so default buffering is
    # kept for maximum lowering compatibility.
    out = pl.pallas_call(
        _qkv_linear_kernel,
        out_shape=jax.ShapeDtypeStruct((Mp_pad, kout), x.dtype),
        grid_spec=pltpu.PrefetchScalarGridSpec(
            num_scalar_prefetch=0,
            grid=grid,
            in_specs=[
                pl.BlockSpec((tm, kin), lambda i: (i, 0)),      # x tile (streamed)
                pl.BlockSpec((kin, kout), lambda i: (0, 0)),    # packed weight (resident)
                pl.BlockSpec((1, kout), lambda i: (0, 0)),      # packed bias (resident)
            ],
            out_specs=pl.BlockSpec((tm, kout), lambda i: (i, 0)),
        ),
        compiler_params=pltpu.CompilerParams(
            dimension_semantics=("parallel",)),
        cost_estimate=pl.CostEstimate(
            flops=flops, transcendentals=0, bytes_accessed=bytes_accessed),
    )(xp, wp, bp)

    out = out.reshape(M_pad, out_dim)[:M].reshape(*lead_shape, out_dim)
    # split([qk_dim, qk_dim + dim], dim=-1)  -> pure slicing (glue in JAX)
    q = out[..., :qk_dim]
    kv = out[..., qk_dim:]
    return q, kv


if __name__ == "__main__":
    # Small shapes consistent with the module: dim=32, qk_dim=16 -> out_dim=64.
    B, H, W, dim, qk_dim = 2, 4, 4, 32, 16
    out_dim = qk_dim + qk_dim + dim  # 64

    key = jax.random.PRNGKey(0)
    kx, kw, kb, kx2 = jax.random.split(key, 4)

    x = jax.random.normal(kx, (B, H, W, dim), dtype=jnp.float32)
    # Deterministic "Linear" params (PyTorch convention: weight (out, in), bias (out,))
    bound = 1.0 / jnp.sqrt(dim)
    weight = jax.random.uniform(kw, (out_dim, dim), minval=-bound, maxval=bound,
                                dtype=jnp.float32)
    bias = jax.random.uniform(kb, (out_dim,), minval=-bound, maxval=bound,
                              dtype=jnp.float32)

    def check(x_in):
        q, kv = qkv_linear(x_in, weight, bias, qk_dim)
        jax.block_until_ready((q, kv))
        ref = jnp.einsum("...c,oc->...o", x_in, weight) + bias
        q_ref, kv_ref = ref[..., :qk_dim], ref[..., qk_dim:]
        assert q.shape == x_in.shape[:-1] + (qk_dim,)
        assert kv.shape == x_in.shape[:-1] + (qk_dim + dim,)
        assert jnp.allclose(q, q_ref, atol=1e-5)
        assert jnp.allclose(kv, kv_ref, atol=1e-5)

    check(x)

    # Ragged token count (B*H*W not divisible by tile or pack factor) -> pads.
    x_odd = jax.random.normal(kx2, (1, 5, 3, dim), dtype=jnp.float32)
    check(x_odd)

    print("KERNEL_OK")
</pallas_src>

<mosaic_0001>
module attributes {stable_mosaic.version = 11 : i64} {
  func.func @_qkv_linear_kernel(%arg0: i32, %arg1: memref<8x128xf32, #tpu.memory_space<vmem>>, %arg2: memref<128x256xf32, #tpu.memory_space<vmem>>, %arg3: memref<1x256xf32, #tpu.memory_space<vmem>>, %arg4: memref<8x256xf32, #tpu.memory_space<vmem>>) attributes {dimension_semantics = [#tpu.dimension_semantics<parallel>], iteration_bounds = array<i64: 1>, scalar_prefetch = 0 : i64, scratch_operands = 0 : i64, tpu.core_type = #tpu.core_type<tc>, window_params = [{transform_indices = @transform_0, window_bounds = array<i64: 8, 128>}, {pipeline_mode = #tpu.pipeline_mode<synchronous>, transform_indices = @transform_1, window_bounds = array<i64: 128, 256>}, {pipeline_mode = #tpu.pipeline_mode<synchronous>, transform_indices = @transform_2, window_bounds = array<i64: 1, 256>}, {transform_indices = @transform_3, window_bounds = array<i64: 8, 256>}]} {
    %c0 = arith.constant 0 : index
    %c0_0 = arith.constant 0 : index
    %0 = vector.load %arg1[%c0, %c0_0] : memref<8x128xf32, #tpu.memory_space<vmem>>, vector<8x128xf32>
    %c0_1 = arith.constant 0 : index
    %c0_2 = arith.constant 0 : index
    %1 = vector.load %arg2[%c0_1, %c0_2] : memref<128x256xf32, #tpu.memory_space<vmem>>, vector<128x256xf32>
    %cst = arith.constant dense<0.000000e+00> : vector<8x256xf32>
    %2 = tpu.matmul %0, %1, %cst {dimension_numbers = #tpu.dot_dimension_numbers<[1], [0], [0], [1], [0, 0, 1, 1], [], []>} : vector<8x128xf32>, vector<128x256xf32>, vector<8x256xf32> -> vector<8x256xf32>
    %c0_3 = arith.constant 0 : index
    %c0_4 = arith.constant 0 : index
    %3 = vector.load %arg3[%c0_3, %c0_4] : memref<1x256xf32, #tpu.memory_space<vmem>>, vector<1x256xf32>
    %4 = vector.broadcast %3 : vector<1x256xf32> to vector<8x256xf32>
    %5 = arith.addf %2, %4 : vector<8x256xf32>
    %c0_5 = arith.constant 0 : index
    %c0_6 = arith.constant 0 : index
    %6 = vector.load %arg4[%c0_5, %c0_6] : memref<8x256xf32, #tpu.memory_space<vmem>>, vector<8x256xf32>
    tpu.vector_store %arg4[%c0_5, %c0_6], %5 {strides = array<i32>} : memref<8x256xf32, #tpu.memory_space<vmem>>, vector<8x256xf32>,
    return
  }
  func.func @transform_0(%arg0: i32) -> (i32, i32) {
    %c0_i32 = arith.constant 0 : i32
    %c0_i32_0 = arith.constant 0 : i32
    return %arg0, %c0_i32 : i32, i32
  }
  func.func @transform_1(%arg0: i32) -> (i32, i32) {
    %c0_i32 = arith.constant 0 : i32
    %c0_i32_0 = arith.constant 0 : i32
    %c0_i32_1 = arith.constant 0 : i32
    return %c0_i32, %c0_i32_0 : i32, i32
  }
  func.func @transform_2(%arg0: i32) -> (i32, i32) {
    %c0_i32 = arith.constant 0 : i32
    %c0_i32_0 = arith.constant 0 : i32
    %c0_i32_1 = arith.constant 0 : i32
    return %c0_i32, %c0_i32_0 : i32, i32
  }
  func.func @transform_3(%arg0: i32) -> (i32, i32) {
    %c0_i32 = arith.constant 0 : i32
    %c0_i32_0 = arith.constant 0 : i32
    return %arg0, %c0_i32 : i32, i32
  }
}

</mosaic_0001>

<llo_original>
// kernel: tpu_custom_call.1
$region0: #{tpu_custom_call.1}
  #allocation0 [shape = 'u32[]', space=smem, size = 0x4, offset = 0x4, fixed_abs, tag = 'smem constant byte address 0x4 - core index']
  #allocation1 [shape = 'u32[144,128]{1,0:T(1,128)}', space=vmem, size = 0x12000, scoped, tag = 'internal scratch']
  %s0 = inlined_call_operand.hbm [shape: f32[8,128], index: 0, kind: input, shape index: {}]
  %s1 = inlined_call_operand.hbm [shape: f32[128,256], index: 1, kind: input, shape index: {}]
  %s2 = inlined_call_operand.vmem [shape: f32[1,256], index: 2, kind: input, shape index: {}]
  %s3 = inlined_call_operand.hbm [shape: f32[8,256], index: 3, kind: output, shape index: {}]
  %s4 = sld [smem:[#allocation0]]
  $region30: #{tpu_custom_call.1} parent=0
    _
  %s6 = ssub.s32 1, %s4
  %s7 = scalar_select 0, %s6, %s4
  $region1: #{tpu_custom_call.1} parent=0
    #allocation2 [shape = 'u8[4096]{0}', space=vmem, size = 0x1000, scoped, tag = 'input window, operand 0, single buffered']
    #allocation3 [shape = 's32[1]{0}', space=sflag, size = 0x4, scoped, tag = 'scoped memory for tpu_custom_call.1']
    #allocation4 [shape = 's32[1]{0}', space=sflag, size = 0x4, scoped, tag = 'scoped memory for tpu_custom_call.1']
    #allocation5 [shape = 'u8[131072]{0}', space=vmem, size = 0x20000, scoped, tag = 'input window, operand 1, single buffered']
    #allocation6 [shape = 's32[1]{0}', space=sflag, size = 0x4, scoped, tag = 'scoped memory for tpu_custom_call.1']
    #allocation7 [shape = 'u8[8192]{0}', space=vmem, size = 0x2000, scoped, tag = 'output window, operand 0, single buffered']
    %8 = vsyncpa [#allocation3], 0
    %9 = vsyncpa [#allocation6], 0
    %10 = vsyncpa [#allocation4], 0
    // Predicated region
    $region2: #{tpu_custom_call.1} parent=1 // pred_check
      _
    $region3: #{tpu_custom_call.1} parent=1 // pred_check_branch
      %12 = sbr.rel (0) target = $region5
    $region4: #{tpu_custom_call.1} parent=1 // pred_region
      %s14 = ssub.s32 128, 128
      %15 = vsyncadd [#allocation3], %s14
      %s17 = sshll.u32 [#allocation2], 4
      %s18 = int_to_ptr.vmem [resolvable:$true] %s17
      %20 = dma.hbm_to_vmem [thread:$0]  %s0, 128, %s18, [#allocation3]
    $region5: #{tpu_custom_call.1} parent=1 // pred_fallthru
      _
    // Predicated region
    $region6: #{tpu_custom_call.1} parent=1 // pred_check
      _
    $region7: #{tpu_custom_call.1} parent=1 // pred_check_branch
      %22 = sbr.rel (0) target = $region9
    $region8: #{tpu_custom_call.1} parent=1 // pred_region
      %s24 = ssub.s32 4096, 4096
      %25 = vsyncadd [#allocation6], %s24
      %s26 = sshll.u32 [#allocation5], 4
      %s27 = int_to_ptr.vmem [resolvable:$true] %s26
      %32 = dma.hbm_to_vmem [thread:$0]  %s1, 4096, %s27, [#allocation6], 256, 256, 16
    $region9: #{tpu_custom_call.1} parent=1 // pred_fallthru
      _
    // Predicated region
    $region10: #{tpu_custom_call.1} parent=1 // pred_check
      _
    $region11: #{tpu_custom_call.1} parent=1 // pred_check_branch
      %34 = sbr.rel (0) target = $region13
    $region12: #{tpu_custom_call.1} parent=1 // pred_region
      _
    $region13: #{tpu_custom_call.1} parent=1 // pred_fallthru
      _
    // Predicated region
    $region14: #{tpu_custom_call.1} parent=1 // pred_check
      _
    $region15: #{tpu_custom_call.1} parent=1 // pred_check_branch
      %36 = sbr.rel (0) target = $region17
    $region16: #{tpu_custom_call.1} parent=1 // pred_region
      %37 = dma.done [#allocation3], 128
    $region17: #{tpu_custom_call.1} parent=1 // pred_fallthru
      _
    // Predicated region
    $region18: #{tpu_custom_call.1} parent=1 // pred_check
      _
    $region19: #{tpu_custom_call.1} parent=1 // pred_check_branch
      %39 = sbr.rel (0) target = $region21
    $region20: #{tpu_custom_call.1} parent=1 // pred_region
      %40 = dma.done [#allocation6], 4096
    $region21: #{tpu_custom_call.1} parent=1 // pred_fallthru
      _
    %v41 = vld [vmem:[#allocation2] sm:$0xff]
    %v42 = vld [vmem:[#allocation5] sm:$0xff]
    %v43 = vld [vmem:[#allocation5 + $0x8] sm:$0xff]
    %v44 = vld [vmem:[#allocation5 + $0x10] sm:$0xff]
    %v45 = vld [vmem:[#allocation5 + $0x18] sm:$0xff]
    %v46 = vld [vmem:[#allocation5 + $0x20] sm:$0xff]
    %v47 = vld [vmem:[#allocation5 + $0x28] sm:$0xff]
    %v48 = vld [vmem:[#allocation5 + $0x30] sm:$0xff]
    %v49 = vld [vmem:[#allocation5 + $0x38] sm:$0xff]
    %v50 = vld [vmem:[#allocation5 + $0x40] sm:$0xff]
    %v51 = vld [vmem:[#allocation5 + $0x48] sm:$0xff]
    %v52 = vld [vmem:[#allocation5 + $0x50] sm:$0xff]
    %v53 = vld [vmem:[#allocation5 + $0x58] sm:$0xff]
    %v54 = vld [vmem:[#allocation5 + $0x60] sm:$0xff]
    %v55 = vld [vmem:[#allocation5 + $0x68] sm:$0xff]
    %v56 = vld [vmem:[#allocation5 + $0x70] sm:$0xff]
    %v57 = vld [vmem:[#allocation5 + $0x78] sm:$0xff]
    %v58 = vld [vmem:[#allocation5 + $0x80] sm:$0xff]
    %v59 = vld [vmem:[#allocation5 + $0x88] sm:$0xff]
    %v60 = vld [vmem:[#allocation5 + $0x90] sm:$0xff]
    %v61 = vld [vmem:[#allocation5 + $0x98] sm:$0xff]
    %v62 = vld [vmem:[#allocation5 + $0xa0] sm:$0xff]
    %v63 = vld [vmem:[#allocation5 + $0xa8] sm:$0xff]
    %v64 = vld [vmem:[#allocation5 + $0xb0] sm:$0xff]
    %v65 = vld [vmem:[#allocation5 + $0xb8] sm:$0xff]
    %v66 = vld [vmem:[#allocation5 + $0xc0] sm:$0xff]
    %v67 = vld [vmem:[#allocation5 + $0xc8] sm:$0xff]
    %v68 = vld [vmem:[#allocation5 + $0xd0] sm:$0xff]
    %v69 = vld [vmem:[#allocation5 + $0xd8] sm:$0xff]
    %v70 = vld [vmem:[#allocation5 + $0xe0] sm:$0xff]
    %v71 = vld [vmem:[#allocation5 + $0xe8] sm:$0xff]
    %v72 = vld [vmem:[#allocation5 + $0xf0] sm:$0xff]
    %v73 = vld [vmem:[#allocation5 + $0xf8] sm:$0xff]
    %v74 = vld [vmem:[%s2] sm:$0x3]
    %v76 = vlaneseq
    %v77 = vshrl.u32 %v76, 7
    %v78 = vsub.s32 0, %v77
    %v79 = vrot.slane %v74, %v78
    %v80 = vlaneseq
    %v81 = vshrl.u32 %v80, 7
    %v82 = vsub.s32 1, %v81
    %v83 = vrot.slane %v74, %v82
    %86 = vmatprep.subr.mxu0 %v43
    %87 = vmatpush1.msra.mxu0 %v42
    %88 = vmatprep.subr.mxu0 %v45
    %89 = vmatpush1.msra.mxu0 %v44
    %90 = vmatprep.subr.mxu0 %v47
    %91 = vmatpush1.msra.mxu0 %v46
    %92 = vmatprep.subr.mxu0 %v49
    %93 = vmatpush1.msra.mxu0 %v48
    %94 = vmatprep.subr.mxu0 %v51
    %95 = vmatpush1.msra.mxu0 %v50
    %96 = vmatprep.subr.mxu0 %v53
    %97 = vmatpush1.msra.mxu0 %v52
    %98 = vmatprep.subr.mxu0 %v55
    %99 = vmatpush1.msra.mxu0 %v54
    %100 = vmatprep.subr.mxu0 %v57
    %101 = vmatpush1.msra.mxu0 %v56
    %102 = vmatprep.subr.mxu0 %v59
    %103 = vmatpush1.msra.mxu0 %v58
    %104 = vmatprep.subr.mxu0 %v61
    %105 = vmatpush1.msra.mxu0 %v60
    %106 = vmatprep.subr.mxu0 %v63
    %107 = vmatpush1.msra.mxu0 %v62
    %108 = vmatprep.subr.mxu0 %v65
    %109 = vmatpush1.msra.mxu0 %v64
    %110 = vmatprep.subr.mxu0 %v67
    %111 = vmatpush1.msra.mxu0 %v66
    %112 = vmatprep.subr.mxu0 %v69
    %113 = vmatpush1.msra.mxu0 %v68
    %114 = vmatprep.subr.mxu0 %v71
    %115 = vmatpush1.msra.mxu0 %v70
    %116 = vmatprep.subr.mxu0 %v73
    %117 = vmatpush1.msra.mxu0 %v72
    %118 = vmatprep.subr.mxu0 0.0
    %119 = vmatpush1.msra.mxu0 0.0
    %120 = vmatprep.subr.mxu0 0.0
    %121 = vmatpush1.msra.mxu0 0.0
    %122 = vmatprep.subr.mxu0 0.0
    %123 = vmatpush1.msra.mxu0 0.0
    %124 = vmatprep.subr.mxu0 0.0
    %125 = vmatpush1.msra.mxu0 0.0
    %126 = vmatprep.subr.mxu0 0.0
    %127 = vmatpush1.msra.mxu0 0.0
    %128 = vmatprep.subr.mxu0 0.0
    %129 = vmatpush1.msra.mxu0 0.0
    %130 = vmatprep.subr.mxu0 0.0
    %131 = vmatpush1.msra.mxu0 0.0
    %132 = vmatprep.subr.mxu0 0.0
    %133 = vmatpush1.msra.mxu0 0.0
    %134 = vmatprep.subr.mxu0 0.0
    %135 = vmatpush1.msra.mxu0 0.0
    %136 = vmatprep.subr.mxu0 0.0
    %137 = vmatpush1.msra.mxu0 0.0
    %138 = vmatprep.subr.mxu0 0.0
    %139 = vmatpush1.msra.mxu0 0.0
    %140 = vmatprep.subr.mxu0 0.0
    %141 = vmatpush1.msra.mxu0 0.0
    %142 = vmatprep.subr.mxu0 0.0
    %143 = vmatpush1.msra.mxu0 0.0
    %144 = vmatprep.subr.mxu0 0.0
    %145 = vmatpush1.msra.mxu0 0.0
    %146 = vmatprep.subr.mxu0 0.0
    %147 = vmatpush1.msra.mxu0 0.0
    %148 = vmatprep.subr.mxu0 0.0
    %149 = vmatpush1.msra.mxu0 0.0
    %150 = vmatprep.mubr.f32.mxu0 0.0
    %151 = vmatmul.mubr.f32.gmra.mrb[0].mxu0 %v41
    %v152 = vpop.f32.mrb[0].mxu0
    %v153 = vadd.f32 %v79, %v152
    %v154 = vpop.f32.mrb[0].mxu0
    %v155 = vadd.f32 %v83, %v154
    %156 = vdwg.mxu0
    %157 = vst [vmem:[#allocation7] sm:$0xff] %v153
    %158 = vst [vmem:[#allocation7 + $0x8] sm:$0xff] %v155
    // Predicated region
    $region22: #{tpu_custom_call.1} parent=1 // pred_check
      _
    $region23: #{tpu_custom_call.1} parent=1 // pred_check_branch
      %160 = sbr.rel (0) target = $region25
    $region24: #{tpu_custom_call.1} parent=1 // pred_region
      %s162 = ssub.s32 256, 256
      %163 = vsyncadd [#allocation4], %s162
      %s165 = sshll.u32 [#allocation7], 4
      %s166 = int_to_ptr.vmem [resolvable:$true] %s165
      %168 = dma.vmem_to_hbm [thread:$0]  %s166, 256, %s3, [#allocation4]
    $region25: #{tpu_custom_call.1} parent=1 // pred_fallthru
      _
    // Predicated region
    $region26: #{tpu_custom_call.1} parent=1 // pred_check
      _
    $region27: #{tpu_custom_call.1} parent=1 // pred_check_branch
      %170 = sbr.rel (0) target = $region29
    $region28: #{tpu_custom_call.1} parent=1 // pred_region
      %171 = dma.done [#allocation4], 256
    $region29: #{tpu_custom_call.1} parent=1 // pred_fallthru
      _
    %172 = vsyncpa [#allocation3], 1
    %173 = vsyncpa [#allocation6], 1
    %174 = vsyncpa [#allocation4], 1

</llo_original>
